<compile_context>
chip_gen: v7x
topology: tpu7x:2x2x1
jax: 0.10.0
libtpu: 0.0.40
codegen_flags: <defaults>
</compile_context>

<pallas_src>
import functools

import jax
import jax.numpy as jnp
from jax import lax
from jax.experimental import pallas as pl
from jax.experimental.pallas import tpu as pltpu


def _round_up(x, m):
    return ((x + m - 1) // m) * m


# ---------------------------------------------------------------------------
# Pallas kernel
# ---------------------------------------------------------------------------
def _hstu_attn_kernel(
    len_ref, ctx_ref, tgt_ref,            # scalar prefetch (SMEM), each (B,) int32
    q_ref, k_ref, v_ref,                  # VMEM tiles (1, TQ/TK, H*D) bf16
    o_ref,                                # VMEM out tile (1, TQ, H*Dv) f32
    acc_ref,                              # VMEM scratch (TQ, H*Dv) f32
    *, alpha, max_seqlen, is_causal, target_group_size,
    num_heads, attn_dim, v_dim, tq_blk, tk_blk,
):
    b = pl.program_id(0)
    qi = pl.program_id(1)
    ki = pl.program_id(2)
    nk = pl.num_programs(2)

    L = len_ref[b]                        # actual sequence length
    C = ctx_ref[b]                        # num contextual tokens
    T = tgt_ref[b]                        # num candidate/target tokens

    q_start = qi * tq_blk
    kv_start = ki * tk_blk

    @pl.when(ki == 0)
    def _init():
        acc_ref[...] = jnp.zeros_like(acc_ref)

    # Skip tiles that are entirely in the padded region (row >= L or col >= L
    # would zero everything anyway).
    @pl.when((kv_start < L) & (q_start < L))
    def _compute():
        # ---- validity mask: built once (head-independent) from 1-D ids ----
        row = q_start + lax.broadcasted_iota(jnp.int32, (tq_blk, 1), 0)
        col = kv_start + lax.broadcasted_iota(jnp.int32, (1, tk_blk), 1)
        max_id = L - C + 1 - T
        ids_row = jnp.minimum(jnp.maximum(row - C + 1, 0), max_id)   # (TQ, 1)
        ids_col = jnp.minimum(jnp.maximum(col - C + 1, 0), max_id)   # (1, TK)
        if is_causal:
            valid = (row == col) | (ids_row > ids_col)
        else:
            valid = (row == col) | (ids_row != ids_col)
        # contextual rows attend to every contextual / history column
        valid = valid | ((ids_row == 0) & (ids_col < max_id))
        if target_group_size > 1:
            # TODO(synk): group-causal attention among candidates is a best-effort
            # reconstruction of the reference kernel's target_group_size handling.
            s0 = L - T
            rg = (row - s0) // target_group_size                     # (TQ, 1)
            cg = (col - s0) // target_group_size                     # (1, TK)
            grp = (row >= s0) & (col >= s0) & (rg == cg)
            if is_causal:
                grp = grp & (col <= row)
            valid = valid | grp
        valid = valid & (row < L) & (col < L)

        q = q_ref[0]                       # (TQ, H*Dqk) bf16
        k = k_ref[0]                       # (TK, H*Dqk) bf16
        v = v_ref[0]                       # (TK, H*Dv)  bf16

        outs = []
        for h in range(num_heads):
            qh = q[:, h * attn_dim:(h + 1) * attn_dim]
            kh = k[:, h * attn_dim:(h + 1) * attn_dim]
            vh = v[:, h * v_dim:(h + 1) * v_dim]
            # q @ k^T without materializing the transpose.
            s = lax.dot_general(qh, kh, (((1,), (1,)), ((), ())),
                                preferred_element_type=jnp.float32)
            s = s * alpha
            a = s * jax.nn.sigmoid(s)                # SiLU, f32
            a = jnp.where(valid, a, 0.0)
            outs.append(lax.dot_general(a.astype(v.dtype), vh,
                                        (((1,), (0,)), ((), ())),
                                        preferred_element_type=jnp.float32))
        o = outs[0] if num_heads == 1 else jnp.concatenate(outs, axis=-1)
        acc_ref[...] += o

    @pl.when(ki == nk - 1)
    def _finalize():
        # 1/max_seqlen applied once to the (TQ, H*Dv) accumulator.
        o_ref[0] = (acc_ref[...] * (1.0 / float(max_seqlen))).astype(o_ref.dtype)


# ---------------------------------------------------------------------------
# Jagged <-> padded glue (plain JAX)
# ---------------------------------------------------------------------------
def _pad_jagged(x, offsets, n_pad):
    # x: (T, F) jagged; offsets: (B+1,) -> (B, n_pad, F) zero padded
    t_total, f = x.shape
    lens = offsets[1:] - offsets[:-1]
    pos = jnp.arange(n_pad)[None, :]
    src = offsets[:-1, None] + pos
    src = jnp.where(pos < lens[:, None], src, t_total)
    x_ext = jnp.concatenate([x, jnp.zeros((1, f), x.dtype)], axis=0)
    return x_ext[src]


def _unpad_jagged(xp, offsets, total):
    # xp: (B, N, F) -> (total, F)
    b, n, f = xp.shape
    t = jnp.arange(total)
    batch_ids = jnp.clip(jnp.searchsorted(offsets, t, side="right") - 1, 0, b - 1)
    local = t - offsets[batch_ids]
    return xp.reshape(b * n, f)[batch_ids * n + local]


# ---------------------------------------------------------------------------
# Wrapper == TorchHSTUAttention.forward
# ---------------------------------------------------------------------------
def hstu_attention(
    tq, tk, tv, offsets, max_seqlen,
    *, num_heads, attention_dim, linear_dim, is_causal=True,
    target_group_size=1, num_candidates=None, num_contextuals=None,
    block_size=512,
):
    B = offsets.shape[0] - 1
    total = tq.shape[0]
    lens = (offsets[1:] - offsets[:-1]).astype(jnp.int32)

    if num_candidates is None:
        num_candidates = jnp.zeros((B,), jnp.int32)
    else:
        num_candidates = num_candidates.astype(jnp.int32)
    if num_contextuals is None:
        num_contextuals = jnp.zeros((B,), jnp.int32)
    elif isinstance(num_contextuals, int):
        num_contextuals = jnp.full((B,), num_contextuals, jnp.int32)
    else:
        num_contextuals = num_contextuals.astype(jnp.int32)

    # Tile sizes: one chunk size for both Q and KV; multiple of 8 (sublanes),
    # capped so per-step residency stays well under scoped VMEM on all chips.
    chunk = min(int(block_size), _round_up(max_seqlen, 8))
    chunk = _round_up(max(chunk, 8), 8)
    n_pad = _round_up(max_seqlen, chunk)
    num_q = n_pad // chunk
    num_kv = n_pad // chunk

    hd_q = num_heads * attention_dim
    hd_v = num_heads * linear_dim

    # bf16 operands for the MXU (f32 accumulation inside the kernel); also
    # halves HBM/VMEM traffic.  No head transpose: natural (B, N, H*D) layout.
    qp = _pad_jagged(tq, offsets, n_pad).astype(jnp.bfloat16)
    kp = _pad_jagged(tk, offsets, n_pad).astype(jnp.bfloat16)
    vp = _pad_jagged(tv, offsets, n_pad).astype(jnp.bfloat16)

    alpha = 1.0 / (attention_dim ** 0.5)
    kernel = functools.partial(
        _hstu_attn_kernel, alpha=alpha, max_seqlen=max_seqlen,
        is_causal=is_causal, target_group_size=target_group_size,
        num_heads=num_heads, attn_dim=attention_dim, v_dim=linear_dim,
        tq_blk=chunk, tk_blk=chunk)

    out_padded = pl.pallas_call(
        kernel,
        out_shape=jax.ShapeDtypeStruct((B, n_pad, hd_v), jnp.float32),
        grid_spec=pltpu.PrefetchScalarGridSpec(
            num_scalar_prefetch=3,
            grid=(B, num_q, num_kv),
            in_specs=[
                pl.BlockSpec((1, chunk, hd_q), lambda b, qi, ki, *_: (b, qi, 0)),
                pl.BlockSpec((1, chunk, hd_q), lambda b, qi, ki, *_: (b, ki, 0)),
                pl.BlockSpec((1, chunk, hd_v), lambda b, qi, ki, *_: (b, ki, 0)),
            ],
            out_specs=pl.BlockSpec((1, chunk, hd_v),
                                   lambda b, qi, ki, *_: (b, qi, 0)),
            scratch_shapes=[pltpu.VMEM((chunk, hd_v), jnp.float32)],
        ),
        compiler_params=pltpu.CompilerParams(
            dimension_semantics=("parallel", "parallel", "arbitrary"),
            vmem_limit_bytes=32 * 1024 * 1024),
    )(lens, num_contextuals, num_candidates, qp, kp, vp)

    # (B, n_pad, H*Dv) -> jagged (T, H*Dv)
    return _unpad_jagged(out_padded, offsets, total)


# ---------------------------------------------------------------------------
# Pure-JAX reference (same math) for a sanity check
# ---------------------------------------------------------------------------
def _reference(tq, tk, tv, offsets, max_seqlen, *, num_heads, attention_dim,
               linear_dim, is_causal, target_group_size, num_candidates,
               num_contextuals):
    B = offsets.shape[0] - 1
    N = max_seqlen
    q = _pad_jagged(tq, offsets, N).reshape(B, N, num_heads, attention_dim)
    k = _pad_jagged(tk, offsets, N).reshape(B, N, num_heads, attention_dim)
    v = _pad_jagged(tv, offsets, N).reshape(B, N, num_heads, linear_dim)
    alpha = 1.0 / (attention_dim ** 0.5)
    s = jnp.einsum("bnhd,bmhd->bhnm", q, k,
                   precision=lax.Precision.HIGHEST) * alpha
    a = (s * jax.nn.sigmoid(s)) / N

    lens = (offsets[1:] - offsets[:-1]).astype(jnp.int32)
    row = jnp.arange(N, dtype=jnp.int32)[None, :, None]
    col = jnp.arange(N, dtype=jnp.int32)[None, None, :]
    L = lens[:, None, None]
    C = num_contextuals[:, None, None]
    T = num_candidates[:, None, None]
    max_id = L - C + 1 - T
    ir = jnp.minimum(jnp.maximum(row - C + 1, 0), max_id)
    ic = jnp.minimum(jnp.maximum(col - C + 1, 0), max_id)
    dist = ir - ic
    if not is_causal:
        dist = jnp.abs(dist)
    valid = (row == col) | (dist > 0)
    valid = valid | ((ir == 0) & (ic < max_id))
    if target_group_size > 1:
        start = L - T
        grp = (row >= start) & (col >= start) & (
            ((row - start) // target_group_size)
            == ((col - start) // target_group_size))
        if is_causal:
            grp = grp & (col <= row)
        valid = valid | grp
    valid = valid & (row < L) & (col < L)

    a = a * valid[:, None, :, :].astype(a.dtype)
    o = jnp.einsum("bhnm,bmhv->bnhv", a, v, precision=lax.Precision.HIGHEST)
    return _unpad_jagged(o.reshape(B, N, num_heads * linear_dim),
                         offsets, tq.shape[0])


if __name__ == "__main__":
    def run_case(name, *, num_heads, attention_dim, linear_dim, is_causal,
                 max_seqlen, offsets, num_candidates, num_contextuals,
                 target_group_size, block_size, seed):
        B = offsets.shape[0] - 1
        total = int(offsets[-1])
        key = jax.random.PRNGKey(seed)
        k1, k2, k3 = jax.random.split(key, 3)
        tq = jax.random.normal(k1, (total, num_heads * attention_dim), jnp.float32)
        tk = jax.random.normal(k2, (total, num_heads * attention_dim), jnp.float32)
        tv = jax.random.normal(k3, (total, num_heads * linear_dim), jnp.float32)

        out = hstu_attention(
            tq, tk, tv, offsets, max_seqlen,
            num_heads=num_heads, attention_dim=attention_dim,
            linear_dim=linear_dim, is_causal=is_causal,
            target_group_size=target_group_size,
            num_candidates=num_candidates, num_contextuals=num_contextuals,
            block_size=block_size)
        out = jax.block_until_ready(out)

        ctx = num_contextuals
        if ctx is None:
            ctx = jnp.zeros((B,), jnp.int32)
        elif isinstance(ctx, int):
            ctx = jnp.full((B,), ctx, jnp.int32)
        else:
            ctx = ctx.astype(jnp.int32)
        cand = (num_candidates if num_candidates is not None
                else jnp.zeros((B,), jnp.int32)).astype(jnp.int32)

        ref = _reference(
            tq, tk, tv, offsets, max_seqlen,
            num_heads=num_heads, attention_dim=attention_dim,
            linear_dim=linear_dim, is_causal=is_causal,
            target_group_size=target_group_size,
            num_candidates=cand, num_contextuals=ctx)

        assert out.shape == (total, num_heads * linear_dim), name
        assert bool(jnp.all(jnp.isfinite(out))), name
        assert bool(jnp.allclose(out, ref, atol=2e-2, rtol=2e-2)), name

    # module config: num_heads=2, attention_dim=32, linear_dim=32, is_causal=True
    run_case("basic",
             num_heads=2, attention_dim=32, linear_dim=32, is_causal=True,
             max_seqlen=8, offsets=jnp.array([0, 6, 14], jnp.int32),
             num_candidates=jnp.array([2, 3], jnp.int32),
             num_contextuals=jnp.array([1, 2], jnp.int32),
             target_group_size=1, block_size=512, seed=0)

    # multi-chunk path: 3 Q-chunks x 3 KV-chunks, int contextuals,
    # target_group_size > 1, short sequences exercising the dead-chunk skip.
    run_case("multi_chunk",
             num_heads=2, attention_dim=32, linear_dim=32, is_causal=True,
             max_seqlen=24, offsets=jnp.array([0, 20, 33, 57], jnp.int32),
             num_candidates=jnp.array([4, 2, 6], jnp.int32),
             num_contextuals=2,
             target_group_size=2, block_size=8, seed=1)

    print("KERNEL_OK")
</pallas_src>

<mosaic_0001>
module attributes {stable_mosaic.version = 11 : i64} {
  func.func @_hstu_attn_kernel(%arg0: i32, %arg1: i32, %arg2: i32, %arg3: memref<2xi32, #tpu.memory_space<smem>>, %arg4: memref<2xi32, #tpu.memory_space<smem>>, %arg5: memref<2xi32, #tpu.memory_space<smem>>, %arg6: memref<1x8x64xbf16, #tpu.memory_space<vmem>>, %arg7: memref<1x8x64xbf16, #tpu.memory_space<vmem>>, %arg8: memref<1x8x64xbf16, #tpu.memory_space<vmem>>, %arg9: memref<1x8x64xf32, #tpu.memory_space<vmem>>, %arg10: memref<8x64xf32, #tpu.memory_space<vmem>>) attributes {dimension_semantics = [#tpu.dimension_semantics<parallel>, #tpu.dimension_semantics<parallel>, #tpu.dimension_semantics<arbitrary>], iteration_bounds = array<i64: 2, 1, 1>, scalar_prefetch = 3 : i64, scratch_operands = 1 : i64, tpu.core_type = #tpu.core_type<tc>, window_params = [{transform_indices = @transform_0, window_bounds = array<i64: 1, 8, 64>}, {transform_indices = @transform_1, window_bounds = array<i64: 1, 8, 64>}, {transform_indices = @transform_2, window_bounds = array<i64: 1, 8, 64>}, {transform_indices = @transform_3, window_bounds = array<i64: 1, 8, 64>}]} {
    %0 = arith.index_cast %arg0 : i32 to index
    %1 = memref.load %arg3[%0] : memref<2xi32, #tpu.memory_space<smem>>
    %2 = arith.index_cast %arg0 : i32 to index
    %3 = memref.load %arg4[%2] : memref<2xi32, #tpu.memory_space<smem>>
    %4 = arith.index_cast %arg0 : i32 to index
    %5 = memref.load %arg5[%4] : memref<2xi32, #tpu.memory_space<smem>>
    %c8_i32 = arith.constant 8 : i32
    %6 = arith.muli %arg1, %c8_i32 : i32
    %c8_i32_0 = arith.constant 8 : i32
    %7 = arith.muli %arg2, %c8_i32_0 : i32
    %c0_i32 = arith.constant 0 : i32
    %8 = arith.cmpi eq, %arg2, %c0_i32 : i32
    %9 = arith.extui %8 : i1 to i32
    %c0_i32_1 = arith.constant 0 : i32
    %10 = arith.cmpi ne, %9, %c0_i32_1 : i32
    scf.if %10 {
      %cst = arith.constant 0.000000e+00 : f32
      %19 = vector.broadcast %cst : f32 to vector<8x64xf32>
      %c0 = arith.constant 0 : index
      %c0_5 = arith.constant 0 : index
      %20 = vector.load %arg10[%c0, %c0_5] : memref<8x64xf32, #tpu.memory_space<vmem>>, vector<8x64xf32>
      tpu.vector_store %arg10[%c0, %c0_5], %19 {strides = array<i32>} : memref<8x64xf32, #tpu.memory_space<vmem>>, vector<8x64xf32>,
    } else {
    }
    %11 = arith.cmpi slt, %7, %1 : i32
    %12 = arith.cmpi slt, %6, %1 : i32
    %13 = arith.andi %11, %12 : i1
    %14 = arith.extui %13 : i1 to i32
    %c0_i32_2 = arith.constant 0 : i32
    %15 = arith.cmpi ne, %14, %c0_i32_2 : i32
    scf.if %15 {
      %19 = tpu.iota {dimensions = array<i32: 0>} : vector<8x1xi32>
      %20 = vector.broadcast %6 : i32 to vector<8x1xi32>
      %21 = arith.addi %20, %19 : vector<8x1xi32>
      %22 = tpu.iota {dimensions = array<i32: 1>} : vector<1x8xi32>
      %23 = vector.broadcast %7 : i32 to vector<1x8xi32>
      %24 = arith.addi %23, %22 : vector<1x8xi32>
      %25 = arith.subi %1, %3 : i32
      %c1_i32 = arith.constant 1 : i32
      %26 = arith.addi %25, %c1_i32 : i32
      %27 = arith.subi %26, %5 : i32
      %28 = vector.broadcast %3 : i32 to vector<8x1xi32>
      %29 = arith.subi %21, %28 : vector<8x1xi32>
      %c1_i32_5 = arith.constant 1 : i32
      %30 = vector.broadcast %c1_i32_5 : i32 to vector<8x1xi32>
      %31 = arith.addi %29, %30 : vector<8x1xi32>
      %c0_i32_6 = arith.constant 0 : i32
      %32 = vector.broadcast %c0_i32_6 : i32 to vector<8x1xi32>
      %33 = arith.maxsi %31, %32 : vector<8x1xi32>
      %34 = vector.broadcast %27 : i32 to vector<8x1xi32>
      %35 = arith.minsi %33, %34 : vector<8x1xi32>
      %36 = vector.broadcast %3 : i32 to vector<1x8xi32>
      %37 = arith.subi %24, %36 : vector<1x8xi32>
      %c1_i32_7 = arith.constant 1 : i32
      %38 = vector.broadcast %c1_i32_7 : i32 to vector<1x8xi32>
      %39 = arith.addi %37, %38 : vector<1x8xi32>
      %c0_i32_8 = arith.constant 0 : i32
      %40 = vector.broadcast %c0_i32_8 : i32 to vector<1x8xi32>
      %41 = arith.maxsi %39, %40 : vector<1x8xi32>
      %42 = vector.broadcast %27 : i32 to vector<1x8xi32>
      %43 = arith.minsi %41, %42 : vector<1x8xi32>
      %44 = vector.broadcast %21 : vector<8x1xi32> to vector<8x8xi32>
      %45 = vector.broadcast %24 : vector<1x8xi32> to vector<8x8xi32>
      %46 = arith.cmpi eq, %44, %45 : vector<8x8xi32>
      %47 = vector.broadcast %35 : vector<8x1xi32> to vector<8x8xi32>
      %48 = vector.broadcast %43 : vector<1x8xi32> to vector<8x8xi32>
      %49 = arith.cmpi sgt, %47, %48 : vector<8x8xi32>
      %50 = arith.ori %46, %49 : vector<8x8xi1>
      %c0_i32_9 = arith.constant 0 : i32
      %51 = vector.broadcast %c0_i32_9 : i32 to vector<8x1xi32>
      %52 = arith.cmpi eq, %35, %51 : vector<8x1xi32>
      %53 = vector.broadcast %27 : i32 to vector<1x8xi32>
      %54 = arith.cmpi slt, %43, %53 : vector<1x8xi32>
      %55 = vector.broadcast %52 : vector<8x1xi1> to vector<8x8xi1>
      %56 = vector.broadcast %54 : vector<1x8xi1> to vector<8x8xi1>
      %57 = arith.andi %55, %56 : vector<8x8xi1>
      %58 = arith.ori %50, %57 : vector<8x8xi1>
      %59 = vector.broadcast %1 : i32 to vector<8x1xi32>
      %60 = arith.cmpi slt, %21, %59 : vector<8x1xi32>
      %61 = vector.broadcast %60 : vector<8x1xi1> to vector<8x8xi1>
      %62 = arith.andi %58, %61 : vector<8x8xi1>
      %63 = vector.broadcast %1 : i32 to vector<1x8xi32>
      %64 = arith.cmpi slt, %24, %63 : vector<1x8xi32>
      %65 = vector.broadcast %64 : vector<1x8xi1> to vector<8x8xi1>
      %66 = arith.andi %62, %65 : vector<8x8xi1>
      %c0 = arith.constant 0 : index
      %c0_10 = arith.constant 0 : index
      %c0_11 = arith.constant 0 : index
      %67 = vector.load %arg6[%c0, %c0_10, %c0_11] : memref<1x8x64xbf16, #tpu.memory_space<vmem>>, vector<1x8x64xbf16>
      %68 = vector.shape_cast %67 : vector<1x8x64xbf16> to vector<8x64xbf16>
      %c0_12 = arith.constant 0 : index
      %c0_13 = arith.constant 0 : index
      %c0_14 = arith.constant 0 : index
      %69 = vector.load %arg7[%c0_12, %c0_13, %c0_14] : memref<1x8x64xbf16, #tpu.memory_space<vmem>>, vector<1x8x64xbf16>
      %70 = vector.shape_cast %69 : vector<1x8x64xbf16> to vector<8x64xbf16>
      %c0_15 = arith.constant 0 : index
      %c0_16 = arith.constant 0 : index
      %c0_17 = arith.constant 0 : index
      %71 = vector.load %arg8[%c0_15, %c0_16, %c0_17] : memref<1x8x64xbf16, #tpu.memory_space<vmem>>, vector<1x8x64xbf16>
      %72 = vector.shape_cast %71 : vector<1x8x64xbf16> to vector<8x64xbf16>
      %73 = vector.extract_strided_slice %68 {offsets = [0, 0], sizes = [8, 32], strides = [1, 1]} : vector<8x64xbf16> to vector<8x32xbf16>
      %74 = vector.extract_strided_slice %70 {offsets = [0, 0], sizes = [8, 32], strides = [1, 1]} : vector<8x64xbf16> to vector<8x32xbf16>
      %75 = vector.extract_strided_slice %72 {offsets = [0, 0], sizes = [8, 32], strides = [1, 1]} : vector<8x64xbf16> to vector<8x32xbf16>
      %cst = arith.constant dense<0.000000e+00> : vector<8x8xf32>
      %76 = tpu.matmul %73, %74, %cst {dimension_numbers = #tpu.dot_dimension_numbers<[1], [1], [0], [0], [0, 0, 1, 0], [], []>} : vector<8x32xbf16>, vector<8x32xbf16>, vector<8x8xf32> -> vector<8x8xf32>
      %cst_18 = arith.constant 0.176776692 : f32
      %77 = vector.broadcast %cst_18 : f32 to vector<8x8xf32>
      %78 = arith.mulf %76, %77 : vector<8x8xf32>
      %79 = arith.negf %78 : vector<8x8xf32>
      %80 = math.exp %79 : vector<8x8xf32>
      %cst_19 = arith.constant 1.000000e+00 : f32
      %81 = vector.broadcast %cst_19 : f32 to vector<8x8xf32>
      %82 = arith.addf %81, %80 : vector<8x8xf32>
      %83 = arith.divf %81, %82 : vector<8x8xf32>
      %84 = arith.mulf %78, %83 : vector<8x8xf32>
      %cst_20 = arith.constant 0.000000e+00 : f32
      %85 = vector.broadcast %cst_20 : f32 to vector<8x8xf32>
      %86 = arith.select %66, %84, %85 : vector<8x8xi1>, vector<8x8xf32>
      %87 = arith.truncf %86 : vector<8x8xf32> to vector<8x8xbf16>
      %cst_21 = arith.constant dense<0.000000e+00> : vector<8x32xf32>
      %88 = tpu.matmul %87, %75, %cst_21 {dimension_numbers = #tpu.dot_dimension_numbers<[1], [0], [0], [1], [0, 0, 1, 1], [], []>} : vector<8x8xbf16>, vector<8x32xbf16>, vector<8x32xf32> -> vector<8x32xf32>
      %89 = vector.extract_strided_slice %68 {offsets = [0, 32], sizes = [8, 32], strides = [1, 1]} : vector<8x64xbf16> to vector<8x32xbf16>
      %90 = vector.extract_strided_slice %70 {offsets = [0, 32], sizes = [8, 32], strides = [1, 1]} : vector<8x64xbf16> to vector<8x32xbf16>
      %91 = vector.extract_strided_slice %72 {offsets = [0, 32], sizes = [8, 32], strides = [1, 1]} : vector<8x64xbf16> to vector<8x32xbf16>
      %cst_22 = arith.constant dense<0.000000e+00> : vector<8x8xf32>
      %92 = tpu.matmul %89, %90, %cst_22 {dimension_numbers = #tpu.dot_dimension_numbers<[1], [1], [0], [0], [0, 0, 1, 0], [], []>} : vector<8x32xbf16>, vector<8x32xbf16>, vector<8x8xf32> -> vector<8x8xf32>
      %cst_23 = arith.constant 0.176776692 : f32
      %93 = vector.broadcast %cst_23 : f32 to vector<8x8xf32>
      %94 = arith.mulf %92, %93 : vector<8x8xf32>
      %95 = arith.negf %94 : vector<8x8xf32>
      %96 = math.exp %95 : vector<8x8xf32>
      %cst_24 = arith.constant 1.000000e+00 : f32
      %97 = vector.broadcast %cst_24 : f32 to vector<8x8xf32>
      %98 = arith.addf %97, %96 : vector<8x8xf32>
      %99 = arith.divf %97, %98 : vector<8x8xf32>
      %100 = arith.mulf %94, %99 : vector<8x8xf32>
      %cst_25 = arith.constant 0.000000e+00 : f32
      %101 = vector.broadcast %cst_25 : f32 to vector<8x8xf32>
      %102 = arith.select %66, %100, %101 : vector<8x8xi1>, vector<8x8xf32>
      %103 = arith.truncf %102 : vector<8x8xf32> to vector<8x8xbf16>
      %cst_26 = arith.constant dense<0.000000e+00> : vector<8x32xf32>
      %104 = tpu.matmul %103, %91, %cst_26 {dimension_numbers = #tpu.dot_dimension_numbers<[1], [0], [0], [1], [0, 0, 1, 1], [], []>} : vector<8x8xbf16>, vector<8x32xbf16>, vector<8x32xf32> -> vector<8x32xf32>
      %105 = tpu.concatenate %88, %104 in 1 : vector<8x32xf32>, vector<8x32xf32> -> vector<8x64xf32>
      %c0_27 = arith.constant 0 : index
      %c0_28 = arith.constant 0 : index
      %106 = vector.load %arg10[%c0_27, %c0_28] : memref<8x64xf32, #tpu.memory_space<vmem>>, vector<8x64xf32>
      %107 = arith.addf %106, %105 : vector<8x64xf32>
      %c0_29 = arith.constant 0 : index
      %c0_30 = arith.constant 0 : index
      %108 = vector.load %arg10[%c0_29, %c0_30] : memref<8x64xf32, #tpu.memory_space<vmem>>, vector<8x64xf32>
      tpu.vector_store %arg10[%c0_29, %c0_30], %107 {strides = array<i32>} : memref<8x64xf32, #tpu.memory_space<vmem>>, vector<8x64xf32>,
    } else {
    }
    %c0_i32_3 = arith.constant 0 : i32
    %16 = arith.cmpi eq, %arg2, %c0_i32_3 : i32
    %17 = arith.extui %16 : i1 to i32
    %c0_i32_4 = arith.constant 0 : i32
    %18 = arith.cmpi ne, %17, %c0_i32_4 : i32
    scf.if %18 {
      %c0 = arith.constant 0 : index
      %c0_5 = arith.constant 0 : index
      %19 = vector.load %arg10[%c0, %c0_5] : memref<8x64xf32, #tpu.memory_space<vmem>>, vector<8x64xf32>
      %cst = arith.constant 1.250000e-01 : f32
      %20 = vector.broadcast %cst : f32 to vector<8x64xf32>
      %21 = arith.mulf %19, %20 : vector<8x64xf32>
      %c0_6 = arith.constant 0 : index
      %c0_7 = arith.constant 0 : index
      %c0_8 = arith.constant 0 : index
      %22 = vector.load %arg9[%c0_6, %c0_7, %c0_8] : memref<1x8x64xf32, #tpu.memory_space<vmem>>, vector<1x8x64xf32>
      %23 = vector.shape_cast %22 : vector<1x8x64xf32> to vector<8x64xf32>
      %24 = vector.shape_cast %21 : vector<8x64xf32> to vector<1x8x64xf32>
      tpu.vector_store %arg9[%c0_6, %c0_7, %c0_8], %24 {strides = array<i32>} : memref<1x8x64xf32, #tpu.memory_space<vmem>>, vector<1x8x64xf32>,
    } else {
    }
    return
  }
  func.func @transform_0(%arg0: i32, %arg1: i32, %arg2: i32, %arg3: memref<2xi32, #tpu.memory_space<smem>>, %arg4: memref<2xi32, #tpu.memory_space<smem>>, %arg5: memref<2xi32, #tpu.memory_space<smem>>) -> (i32, i32, i32) {
    %c0_i32 = arith.constant 0 : i32
    %c0_i32_0 = arith.constant 0 : i32
    return %arg0, %arg1, %c0_i32 : i32, i32, i32
  }
  func.func @transform_1(%arg0: i32, %arg1: i32, %arg2: i32, %arg3: memref<2xi32, #tpu.memory_space<smem>>, %arg4: memref<2xi32, #tpu.memory_space<smem>>, %arg5: memref<2xi32, #tpu.memory_space<smem>>) -> (i32, i32, i32) {
    %c0_i32 = arith.constant 0 : i32
    %c0_i32_0 = arith.constant 0 : i32
    return %arg0, %arg2, %c0_i32 : i32, i32, i32
  }
  func.func @transform_2(%arg0: i32, %arg1: i32, %arg2: i32, %arg3: memref<2xi32, #tpu.memory_space<smem>>, %arg4: memref<2xi32, #tpu.memory_space<smem>>, %arg5: memref<2xi32, #tpu.memory_space<smem>>) -> (i32, i32, i32) {
    %c0_i32 = arith.constant 0 : i32
    %c0_i32_0 = arith.constant 0 : i32
    return %arg0, %arg2, %c0_i32 : i32, i32, i32
  }
  func.func @transform_3(%arg0: i32, %arg1: i32, %arg2: i32, %arg3: memref<2xi32, #tpu.memory_space<smem>>, %arg4: memref<2xi32, #tpu.memory_space<smem>>, %arg5: memref<2xi32, #tpu.memory_space<smem>>) -> (i32, i32, i32) {
    %c0_i32 = arith.constant 0 : i32
    %c0_i32_0 = arith.constant 0 : i32
    return %arg0, %arg1, %c0_i32 : i32, i32, i32
  }
}

</mosaic_0001>

<llo_original>
// kernel: tpu_custom_call.1
$region0: #{tpu_custom_call.1}
  #allocation0 [shape = 'u32[]', space=smem, size = 0x4, offset = 0x4, fixed_abs, tag = 'smem constant byte address 0x4 - core index']
  #allocation1 [shape = 'u32[144,128]{1,0:T(1,128)}', space=vmem, size = 0x12000, scoped, tag = 'internal scratch']
  #allocation2 [shape = 'f32[8,64]{1,0:T(8,128)}', space=vmem, size = 0x1000, scoped, tag = 'scratch operand']
  #allocation3 [shape = 's32[1]{0}', space=sflag, size = 0x4, scoped, tag = 'scoped memory for tpu_custom_call.1']
  #allocation4 [shape = 'u8[512]{0}', space=smem, size = 0x200, scoped, tag = 'prefetched SMEM operand 0']
  #allocation5 [shape = 'u8[512]{0}', space=smem, size = 0x200, scoped, tag = 'prefetched SMEM operand 1']
  #allocation6 [shape = 'u8[512]{0}', space=smem, size = 0x200, scoped, tag = 'prefetched SMEM operand 2']
  %s0 = inlined_call_operand.hbm [shape: s32[2], index: 0, kind: input, shape index: {}]
  %s1 = inlined_call_operand.vmem [shape: s32[2], index: 1, kind: input, shape index: {}]
  %s2 = inlined_call_operand.vmem [shape: s32[2], index: 2, kind: input, shape index: {}]
  %s3 = inlined_call_operand.vmem [shape: bf16[2,8,64], index: 3, kind: input, shape index: {}]
  %s4 = inlined_call_operand.hbm [shape: bf16[2,8,64], index: 4, kind: input, shape index: {}]
  %s5 = inlined_call_operand.vmem [shape: bf16[2,8,64], index: 5, kind: input, shape index: {}]
  %s6 = inlined_call_operand.hbm [shape: f32[2,8,64], index: 6, kind: output, shape index: {}]
  %s7 = sld [smem:[#allocation0]]
  $region61: #{tpu_custom_call.1} parent=0
    _
  %s9 = ssub.s32 1, %s7
  %s10 = scalar_select 0, %s9, %s7
  %12 = dma.hbm_to_smem %s0, 16, [#allocation4], [#allocation3]
  %s13 = sshll.u32 %s1, 4
  %s14 = int_to_ptr.vmem [resolvable:$true] %s13
  %16 = dma.vmem_to_smem %s14, 16, [#allocation5], [#allocation3]
  %s17 = sshll.u32 %s2, 4
  %s18 = int_to_ptr.vmem [resolvable:$true] %s17
  %20 = dma.vmem_to_smem %s18, 16, [#allocation6], [#allocation3]
  %21 = dma.done [#allocation3], 48
  %22 = sfence
  $region1: #{tpu_custom_call.1} parent=0
    #allocation7 [shape = 'u8[4096]{0}', space=vmem, size = 0x1000, scoped, tag = 'input window, operand 4']
    #allocation8 [shape = 's32[2]{0}', space=sflag, size = 0x8, scoped, tag = 'scoped memory for tpu_custom_call.1']
    #allocation9 [shape = 's32[2]{0}', space=sflag, size = 0x8, scoped, tag = 'scoped memory for tpu_custom_call.1']
    #allocation10 [shape = 'u8[8192]{0}', space=vmem, size = 0x2000, scoped, tag = 'output window, operand 0']
    %23 = vsyncpa [#allocation8], 0
    %s24 = scalar_lea.sflag [#allocation8], 1
    %25 = vsyncpa %s24, 0
    %26 = vsyncpa [#allocation9], 0
    %s27 = scalar_lea.sflag [#allocation9], 1
    %28 = vsyncpa %s27, 0
    loop: start=0, step=1, limit=4
    $region2: #{tpu_custom_call.1} parent=1 // loop_pre_header
      _
    $region3: #{tpu_custom_call.1} parent=1 // loop_header
      %s30 = sphi 0, %s34
      %p31 = scmp.ge.s32.totalorder %s30, 4
      %s37 = sphi 0, %s56
      %s38 = sphi 0, %s52
      %s39 = sphi 0, %s48
      %s40 = sphi 0, %s37
      %s41 = sphi 0, %s38
      %s42 = sphi 0, %s39
      %s43 = sphi 0, %s40
      %s44 = sphi 0, %s41
      %s45 = sphi 0, %s42
      %s61 = sphi 0, %s63
      %s64 = sphi 0, %s61
      %s65 = sphi 0, %s64
      %s81 = sphi 0, %s65
      %s89 = sphi 0, %s91
      %s92 = sphi 0, %s89
      %s93 = sphi 0, %s92
      %s109 = sphi 0, %s93
      %s117 = sphi 0, %s119
      %s120 = sphi 0, %s117
      %s121 = sphi 0, %s120
      %s137 = sphi 0, %s121
      %s145 = sphi 0, %s147
      %s148 = sphi 0, %s145
      %s149 = sphi 0, %s148
      %s165 = sphi 0, %s149
    $region4: #{tpu_custom_call.1} parent=1 // loop_header_branch
      %33 = sbr.rel (%p31) target = $region8
    $region5: #{tpu_custom_call.1} parent=1 // loop_body
      %s35 = ssub.s32 %s30, 1
      %s36 = ssub.s32 %s30, 2
      %s46 = sadd.s32 1, %s39
      %p47 = scmp.ge.s32.totalorder %s46, 1
      %s48 = scalar_select %p47, 0, %s46
      %s49 = sadd.s32 1, %s38
      %s50 = scalar_select %p47, %s49, %s38
      %p51 = scmp.ge.s32.totalorder %s50, 1
      %s52 = scalar_select %p51, 0, %s50
      %s53 = sadd.s32 1, %s37
      %s54 = scalar_select %p51, %s53, %s37
      %p55 = scmp.ge.s32.totalorder %s54, 2
      %s56 = scalar_select %p55, 0, %s54
      %s57 = ssub.s32 %s37, %s56
      %s58 = ssub.s32 %s38, %s52
      %s59 = sor.u32 %s57, %s58
      %p60 = scmp.eq.s32.totalorder %s59, 0
      %s62 = sadd.s32 %s61, 1
      %s63 = scalar_select %p60, %s61, %s62
      %p66 = pneg %p60
      %p67 = scmp.eq.s32.totalorder %s30, 1
      %p68 = por %p66, %p67
      %p69 = scmp.ne.s32.totalorder %s61, %s64
      %p70 = scmp.eq.s32.totalorder %s30, 0
      %p71 = por %p69, %p70
      %p72 = scmp.ne.s32.totalorder %s61, %s64
      %p73 = scmp.eq.s32.totalorder %s35, 1
      %p74 = por %p72, %p73
      %p75 = scmp.ne.s32.totalorder %s64, %s65
      %p76 = scmp.eq.s32.totalorder %s35, 0
      %p77 = por %p75, %p76
      %p78 = scmp.ne.s32.totalorder %s64, %s65
      %p79 = scmp.eq.s32.totalorder %s36, 1
      %p80 = por %p78, %p79
      %p82 = scmp.ne.s32.totalorder %s65, %s81
      %p83 = scmp.eq.s32.totalorder %s36, 0
      %p84 = por %p82, %p83
      %s85 = ssub.s32 %s37, %s56
      %s86 = ssub.s32 %s39, %s48
      %s87 = sor.u32 %s85, %s86
      %p88 = scmp.eq.s32.totalorder %s87, 0
      %s90 = sadd.s32 %s89, 1
      %s91 = scalar_select %p88, %s89, %s90
      %p94 = pneg %p88
      %p95 = scmp.eq.s32.totalorder %s30, 1
      %p96 = por %p94, %p95
      %p97 = scmp.ne.s32.totalorder %s89, %s92
      %p98 = scmp.eq.s32.totalorder %s30, 0
      %p99 = por %p97, %p98
      %p100 = scmp.ne.s32.totalorder %s89, %s92
      %p101 = scmp.eq.s32.totalorder %s35, 1
      %p102 = por %p100, %p101
      %p103 = scmp.ne.s32.totalorder %s92, %s93
      %p104 = scmp.eq.s32.totalorder %s35, 0
      %p105 = por %p103, %p104
      %p106 = scmp.ne.s32.totalorder %s92, %s93
      %p107 = scmp.eq.s32.totalorder %s36, 1
      %p108 = por %p106, %p107
      %p110 = scmp.ne.s32.totalorder %s93, %s109
      %p111 = scmp.eq.s32.totalorder %s36, 0
      %p112 = por %p110, %p111
      %s113 = ssub.s32 %s37, %s56
      %s114 = ssub.s32 %s39, %s48
      %s115 = sor.u32 %s113, %s114
      %p116 = scmp.eq.s32.totalorder %s115, 0
      %s118 = sadd.s32 %s117, 1
      %s119 = scalar_select %p116, %s117, %s118
      %p122 = pneg %p116
      %p123 = scmp.eq.s32.totalorder %s30, 1
      %p124 = por %p122, %p123
      %p125 = scmp.ne.s32.totalorder %s117, %s120
      %p126 = scmp.eq.s32.totalorder %s30, 0
      %p127 = por %p125, %p126
      %p128 = scmp.ne.s32.totalorder %s117, %s120
      %p129 = scmp.eq.s32.totalorder %s35, 1
      %p130 = por %p128, %p129
      %p131 = scmp.ne.s32.totalorder %s120, %s121
      %p132 = scmp.eq.s32.totalorder %s35, 0
      %p133 = por %p131, %p132
      %p134 = scmp.ne.s32.totalorder %s120, %s121
      %p135 = scmp.eq.s32.totalorder %s36, 1
      %p136 = por %p134, %p135
      %p138 = scmp.ne.s32.totalorder %s121, %s137
      %p139 = scmp.eq.s32.totalorder %s36, 0
      %p140 = por %p138, %p139
      %s141 = ssub.s32 %s37, %s56
      %s142 = ssub.s32 %s38, %s52
      %s143 = sor.u32 %s141, %s142
      %p144 = scmp.eq.s32.totalorder %s143, 0
      %s146 = sadd.s32 %s145, 1
      %s147 = scalar_select %p144, %s145, %s146
      %p150 = pneg %p144
      %p151 = scmp.eq.s32.totalorder %s30, 1
      %p152 = por %p150, %p151
      %p153 = scmp.ne.s32.totalorder %s145, %s148
      %p154 = scmp.eq.s32.totalorder %s30, 0
      %p155 = por %p153, %p154
      %p156 = scmp.ne.s32.totalorder %s145, %s148
      %p157 = scmp.eq.s32.totalorder %s35, 1
      %p158 = por %p156, %p157
      %p159 = scmp.ne.s32.totalorder %s148, %s149
      %p160 = scmp.eq.s32.totalorder %s35, 0
      %p161 = por %p159, %p160
      %p162 = scmp.ne.s32.totalorder %s148, %s149
      %p163 = scmp.eq.s32.totalorder %s36, 1
      %p164 = por %p162, %p163
      %p166 = scmp.ne.s32.totalorder %s149, %s165
      %p167 = scmp.eq.s32.totalorder %s36, 0
      %p168 = por %p166, %p167
      %p169 = scmp.le.s32.totalorder 1, %s30
      %p170 = scmp.lt.s32.totalorder %s30, 3
      %p171 = pnand %p169, %p170
      %p172 = pneg %p171
      // Predicated region
      $region9: #{tpu_custom_call.1} parent=5 // pred_check
        _
      $region10: #{tpu_custom_call.1} parent=5 // pred_check_branch
        %174 = sbr.rel (%p171) target = $region12
      $region11: #{tpu_custom_call.1} parent=5 // pred_region
        %s175 = ssub.s32 %s30, 1
      $region12: #{tpu_custom_call.1} parent=5 // pred_fallthru
        _
      %p176 = scmp.lt.s32.totalorder %s30, 2
      // Predicated region
      $region13: #{tpu_custom_call.1} parent=5 // pred_check
        %p177 = pneg %p176
      $region14: #{tpu_custom_call.1} parent=5 // pred_check_branch
        %179 = sbr.rel (%p177) target = $region16
      $region15: #{tpu_custom_call.1} parent=5 // pred_region
        // Predicated region
        $region17: #{tpu_custom_call.1} parent=15 // pred_check
          %p180 = pneg %p71
        $region18: #{tpu_custom_call.1} parent=15 // pred_check_branch
          %182 = sbr.rel (%p180) target = $region20
        $region19: #{tpu_custom_call.1} parent=15 // pred_region
          %p183 = scmp.lt.s32.totalorder %s37, 1
          %s184 = scalar_select %p183, %s37, 1
          %p185 = scmp.lt.s32.totalorder %s38, 0
          %s186 = scalar_select %p185, %s38, 0
          %s187 = sadd.s32 %s186, %s184
          %s188 = smul.addr %s187, 4
          %s189 = scalar_lea.vmem %s3, %s188
        $region20: #{tpu_custom_call.1} parent=15 // pred_fallthru
          _
        // Predicated region
        $region21: #{tpu_custom_call.1} parent=15 // pred_check
          %p190 = pneg %p99
        $region22: #{tpu_custom_call.1} parent=15 // pred_check_branch
          %192 = sbr.rel (%p190) target = $region24
        $region23: #{tpu_custom_call.1} parent=15 // pred_region
          %s193 = sand.u32 %s89, 1
          %s194 = scalar_lea.sflag [#allocation8], %s193
          %s195 = sand.u32 %s89, 1
          %s196 = smul.addr %s195, 4
          %s197 = scalar_lea.vmem [#allocation7], %s196
          %s199 = ssub.s32 64, 64
          %200 = vsyncadd %s194, %s199
          %s201 = sadd.s32 %s39, %s37
          %s202 = smul.addr %s201, 64
          %s203 = scalar_lea.hbm %s4, %s202
          %s205 = sshll.u32 %s197, 4
          %s206 = int_to_ptr.vmem [resolvable:$true] %s205
          %208 = dma.hbm_to_vmem [thread:$0]  %s203, 64, %s206, %s194
        $region24: #{tpu_custom_call.1} parent=15 // pred_fallthru
          _
        // Predicated region
        $region25: #{tpu_custom_call.1} parent=15 // pred_check
          %p209 = pneg %p127
        $region26: #{tpu_custom_call.1} parent=15 // pred_check_branch
          %211 = sbr.rel (%p209) target = $region28
        $region27: #{tpu_custom_call.1} parent=15 // pred_region
          %p212 = scmp.lt.s32.totalorder %s37, 1
          %s213 = scalar_select %p212, %s37, 1
          %p214 = scmp.lt.s32.totalorder %s39, 0
          %s215 = scalar_select %p214, %s39, 0
          %s216 = sadd.s32 %s215, %s213
          %s217 = smul.addr %s216, 4
          %s218 = scalar_lea.vmem %s5, %s217
        $region28: #{tpu_custom_call.1} parent=15 // pred_fallthru
          _
      $region16: #{tpu_custom_call.1} parent=5 // pred_fallthru
        _
      %p219 = scmp.le.s32.totalorder 1, %s30
      %p220 = scmp.lt.s32.totalorder %s30, 3
      %p221 = pnand %p219, %p220
      %p222 = pneg %p221
      // Predicated region
      $region29: #{tpu_custom_call.1} parent=5 // pred_check
        _
      $region30: #{tpu_custom_call.1} parent=5 // pred_check_branch
        %224 = sbr.rel (%p221) target = $region32
      $region31: #{tpu_custom_call.1} parent=5 // pred_region
        %s225 = ssub.s32 %s30, 1
        %s226 = sand.u32 %s92, 1
        %s227 = scalar_lea.sflag [#allocation8], %s226
        %s228 = sand.u32 %s92, 1
        %s229 = smul.addr %s228, 4
        %s230 = scalar_lea.vmem [#allocation7], %s229
        // Predicated region
        $region33: #{tpu_custom_call.1} parent=31 // pred_check
          %p231 = pneg %p105
        $region34: #{tpu_custom_call.1} parent=31 // pred_check_branch
          %233 = sbr.rel (%p231) target = $region36
        $region35: #{tpu_custom_call.1} parent=31 // pred_region
          %234 = dma.done %s227, 64
        $region36: #{tpu_custom_call.1} parent=31 // pred_fallthru
          _
        %p235 = scmp.lt.s32.totalorder %s40, 1
        %s236 = scalar_select %p235, %s40, 1
        %p237 = scmp.lt.s32.totalorder %s41, 0
        %s238 = scalar_select %p237, %s41, 0
        %s239 = sadd.s32 %s238, %s236
        %s240 = smul.addr %s239, 4
        %s241 = scalar_lea.vmem %s3, %s240
        %p242 = pneg %p77
        %p243 = pneg %p74
        %s244 = sand.u32 %s92, 1
        %s245 = scalar_lea.sflag [#allocation8], %s244
        %s246 = sand.u32 %s92, 1
        %s247 = smul.addr %s246, 4
        %s248 = scalar_lea.vmem [#allocation7], %s247
        %p249 = pneg %p105
        %p250 = pneg %p102
        %p251 = scmp.lt.s32.totalorder %s40, 1
        %s252 = scalar_select %p251, %s40, 1
        %p253 = scmp.lt.s32.totalorder %s42, 0
        %s254 = scalar_select %p253, %s42, 0
        %s255 = sadd.s32 %s254, %s252
        %s256 = smul.addr %s255, 4
        %s257 = scalar_lea.vmem %s5, %s256
        %p258 = pneg %p133
        %p259 = pneg %p130
        %p260 = pneg %p161
        %p261 = pneg %p158
        %s262 = sand.u32 %s148, 1
        %s263 = scalar_lea.sflag [#allocation9], %s262
        %s264 = sand.u32 %s148, 1
        %s265 = smul.addr %s264, 8
        %s266 = scalar_lea.vmem [#allocation10], %s265
        %p267 = scmp.lt.s32.totalorder %s40, 1
        %s268 = scalar_select %p267, %s40, 1
        %p269 = scmp.lt.s32.totalorder %s41, 0
        %s270 = scalar_select %p269, %s41, 0
        %s271 = sadd.s32 %s270, %s268
        %s272 = smul.addr %s271, 4
        %s273 = scalar_lea.vmem %s3, %s272
        %p274 = scmp.lt.s32.totalorder %s40, 1
        %s275 = scalar_select %p274, %s40, 1
        %p276 = scmp.lt.s32.totalorder %s42, 0
        %s277 = scalar_select %p276, %s42, 0
        %s278 = sadd.s32 %s277, %s275
        %s279 = smul.addr %s278, 4
        %s280 = scalar_lea.vmem %s5, %s279
        %s282 = sld [smem:[#allocation4 + %s40]]
        %s283 = sld [smem:[#allocation5 + %s40]]
        %s284 = sld [smem:[#allocation6 + %s40]]
        %s285 = smul.u32 %s41, 8
        %s286 = smul.u32 %s42, 8
        %p287 = scmp.eq.s32.totalorder %s42, 0
        // Predicated region
        $region37: #{tpu_custom_call.1} parent=31 // pred_check
          %p288 = pneg %p287
        $region38: #{tpu_custom_call.1} parent=31 // pred_check_branch
          %290 = sbr.rel (%p288) target = $region40
        $region39: #{tpu_custom_call.1} parent=31 // pred_region
          %vm291 = vcmask 523264
          %292 = vst.msk [vmem:[#allocation2] sm:$0xff] %vm291, 0.0
        $region40: #{tpu_custom_call.1} parent=31 // pred_fallthru
          _
        %p293 = scmp.lt.s32.totalorder %s286, %s282
        %p294 = scmp.lt.s32.totalorder %s285, %s282
        %p295 = pnand %p293, %p294
        %p296 = pneg %p295
        // Predicated region
        $region41: #{tpu_custom_call.1} parent=31 // pred_check
          _
        $region42: #{tpu_custom_call.1} parent=31 // pred_check_branch
          %298 = sbr.rel (%p295) target = $region44
        $region43: #{tpu_custom_call.1} parent=31 // pred_region
          %v299 = vlaneseq
          %v300 = vshrl.u32 %v299, 7
          %v301 = vstv %s285
          %v302 = vadd.s32 %v301, %v300
          %v303 = vlaneseq
          %v304 = vand.u32 %v303, 127
          %v305 = vstv %s286
          %v306 = vadd.s32 %v305, %v304
          %s307 = ssub.s32 %s282, %s283
          %s308 = sadd.s32 %s307, 1
          %s309 = ssub.s32 %s308, %s284
          %v310 = vstv %s283
          %v311 = vsub.s32 %v302, %v310
          %v312 = vadd.s32 %v311, 1
          %vm313 = vcmp.gt.s32.totalorder %v312, 0
          %v314 = vsel %vm313, %v312, 0
          %v315 = vstv %s309
          %vm316 = vcmp.lt.s32.totalorder %v314, %v315
          %v317 = vsel %vm316, %v314, %v315
          %v318 = vsub.s32 %v306, %v310
          %v319 = vadd.s32 %v318, 1
          %vm320 = vcmp.gt.s32.totalorder %v319, 0
          %v321 = vsel %vm320, %v319, 0
          %vm322 = vcmp.lt.s32.totalorder %v321, %v315
          %v323 = vsel %vm322, %v321, %v315
          %vm324 = vcmp.eq.s32.totalorder %v302, %v306
          %vm325 = vcmp.gt.s32.totalorder %v317, %v323
          %vm326 = vmor %vm324, %vm325
          %vm327 = vcmp.eq.s32.totalorder %v317, 0
          %vm328 = vcmp.lt.s32.totalorder %v323, %v315
          %v329 = vsel %vm327, 1, 0
          %vm330 = vcmp.eq.s32.totalorder %v329, 1
          %v331 = vsel %vm328, 1, 0
          %vm332 = vcmp.eq.s32.totalorder %v331, 1
          %vm333 = vmand %vm330, %vm332
          %vm334 = vmor %vm326, %vm333
          %v335 = vstv %s282
          %vm336 = vcmp.lt.s32.totalorder %v302, %v335
          %v337 = vsel %vm336, 1, 0
          %vm338 = vcmp.eq.s32.totalorder %v337, 1
          %vm339 = vmand %vm334, %vm338
          %vm340 = vcmp.lt.s32.totalorder %v306, %v335
          %v341 = vsel %vm340, 1, 0
          %vm342 = vcmp.eq.s32.totalorder %v341, 1
          %vm343 = vmand %vm339, %vm342
          %v344 = vld [vmem:[%s273] sm:$0xf]
          %v345 = vld [vmem:[%s230] sm:$0xf]
          %v346 = vld [vmem:[%s280] sm:$0xf]
          %vm347 = vcmask 261120
          %v349 = vsel %vm347, %v344, 0
          %v352 = vsel %vm347, %v345, 0
          %354 = vmatprep.subr.bf16.mxu0 0
          %355 = vmatpush1.bf16.xpose.msra.mxu0 %v352
          %356 = vmatprep.subr.bf16.mxu0 0
          %357 = vmatpush1.bf16.xpose.msra.mxu0 0
          %358 = vmatprep.subr.bf16.mxu0 0
          %359 = vmatpush1.bf16.xpose.msra.mxu0 0
          %360 = vmatprep.subr.bf16.mxu0 0
          %361 = vmatpush1.bf16.xpose.msra.mxu0 0
          %362 = vmatprep.subr.bf16.mxu0 0
          %363 = vmatpush1.bf16.xpose.msra.mxu0 0
          %364 = vmatprep.subr.bf16.mxu0 0
          %365 = vmatpush1.bf16.xpose.msra.mxu0 0
          %366 = vmatprep.subr.bf16.mxu0 0
          %367 = vmatpush1.bf16.xpose.msra.mxu0 0
          %368 = vmatprep.subr.bf16.mxu0 0
          %369 = vmatpush1.bf16.xpose.msra.mxu0 0
          %370 = vmatprep.subr.bf16.mxu0 0
          %371 = vmatpush1.bf16.xpose.msra.mxu0 0
          %372 = vmatprep.subr.bf16.mxu0 0
          %373 = vmatpush1.bf16.xpose.msra.mxu0 0
          %374 = vmatprep.subr.bf16.mxu0 0
          %375 = vmatpush1.bf16.xpose.msra.mxu0 0
          %376 = vmatprep.subr.bf16.mxu0 0
          %377 = vmatpush1.bf16.xpose.msra.mxu0 0
          %378 = vmatprep.subr.bf16.mxu0 0
          %379 = vmatpush1.bf16.xpose.msra.mxu0 0
          %380 = vmatprep.subr.bf16.mxu0 0
          %381 = vmatpush1.bf16.xpose.msra.mxu0 0
          %382 = vmatprep.subr.bf16.mxu0 0
          %383 = vmatpush1.bf16.xpose.msra.mxu0 0
          %384 = vmatprep.subr.bf16.mxu0 0
          %385 = vmatpush1.bf16.xpose.msra.mxu0 0
          %386 = vmatprep.mubr.bf16.mxu0 0
          %387 = vmatmul.mubr.bf16.gmra.mrb[0].mxu0 %v349
          %v388 = vpop.f32.mrb[0].mxu0
          %v389 = vadd.f32 0.0, %v388
          %v390 = vpop.f32.mrb[0].mxu0
          %v391 = vpop.f32.mrb[0].mxu0
          %v392 = vpop.f32.mrb[0].mxu0
          %393 = vdwg.mxu0
          %v394 = vmul.f32 %v389, 0.17677669
          %v395 = vxor.u32 %v394, 2147483648
          %v396 = vmul.f32 %v395, 1.442695
          %v397 = vpow.pop %v396
          %v398 = vadd.f32 %v397, 1.0
          %v399 = vrcp.pop %v398
          %v400 = vmul.f32 1.0, %v399
          %v401 = vmul.f32 %v394, %v400
          %v402 = vsel %vm343, %v401, 0.0
          %v403 = vpack.c.bf16 %v402, %v402
          %vm404 = vcmask 64512
          %v406 = vsel %vm404, %v403, 0
          %vm408 = vcmask 1043456
          %v410 = vsel %vm408, %v346, 0
          %412 = vmatprep.subr.bf16.mxu0 0
          %413 = vmatpush1.bf16.msra.mxu0 %v410
          %414 = vmatprep.subr.bf16.mxu0 0
          %415 = vmatpush1.bf16.msra.mxu0 0
          %416 = vmatprep.subr.bf16.mxu0 0
          %417 = vmatpush1.bf16.msra.mxu0 0
          %418 = vmatprep.subr.bf16.mxu0 0
          %419 = vmatpush1.bf16.msra.mxu0 0
          %420 = vmatprep.subr.bf16.mxu0 0
          %421 = vmatpush1.bf16.msra.mxu0 0
          %422 = vmatprep.subr.bf16.mxu0 0
          %423 = vmatpush1.bf16.msra.mxu0 0
          %424 = vmatprep.subr.bf16.mxu0 0
          %425 = vmatpush1.bf16.msra.mxu0 0
          %426 = vmatprep.subr.bf16.mxu0 0
          %427 = vmatpush1.bf16.msra.mxu0 0
          %428 = vmatprep.subr.bf16.mxu0 0
          %429 = vmatpush1.bf16.msra.mxu0 0
          %430 = vmatprep.subr.bf16.mxu0 0
          %431 = vmatpush1.bf16.msra.mxu0 0
          %432 = vmatprep.subr.bf16.mxu0 0
          %433 = vmatpush1.bf16.msra.mxu0 0
          %434 = vmatprep.subr.bf16.mxu0 0
          %435 = vmatpush1.bf16.msra.mxu0 0
          %436 = vmatprep.subr.bf16.mxu0 0
          %437 = vmatpush1.bf16.msra.mxu0 0
          %438 = vmatprep.subr.bf16.mxu0 0
          %439 = vmatpush1.bf16.msra.mxu0 0
          %440 = vmatprep.subr.bf16.mxu0 0
          %441 = vmatpush1.bf16.msra.mxu0 0
          %442 = vmatprep.subr.bf16.mxu0 0
          %443 = vmatpush1.bf16.msra.mxu0 0
          %444 = vmatprep.mubr.bf16.mxu0 0
          %445 = vmatmul.mubr.bf16.gmra.mrb[0].mxu0 %v406
          %v446 = vpop.f32.mrb[0].mxu0
          %v447 = vadd.f32 0.0, %v446
          %v448 = vpop.f32.mrb[0].mxu0
          %v449 = vpop.f32.mrb[0].mxu0
          %v450 = vpop.f32.mrb[0].mxu0
          %451 = vdwg.mxu0
          %v453 = vunpack.c.l.b16 %v344
          %v454 = vpack.c.b16 %v453, %v453
          %455 = vrot.lane.b32.xlu0 %v454, 96
          %v456 = vpop.permute.xlu0 %455
          %v458 = vunpack.c.l.b16 %v345
          %v459 = vpack.c.b16 %v458, %v458
          %460 = vrot.lane.b32.xlu0 %v459, 96
          %v461 = vpop.permute.xlu0 %460
          %v463 = vsel %vm347, %v456, 0
          %v466 = vsel %vm347, %v461, 0
          %468 = vmatprep.subr.bf16.mxu0 0
          %469 = vmatpush1.bf16.xpose.msra.mxu0 %v466
          %470 = vmatprep.subr.bf16.mxu0 0
          %471 = vmatpush1.bf16.xpose.msra.mxu0 0
          %472 = vmatprep.subr.bf16.mxu0 0
          %473 = vmatpush1.bf16.xpose.msra.mxu0 0
          %474 = vmatprep.subr.bf16.mxu0 0
          %475 = vmatpush1.bf16.xpose.msra.mxu0 0
          %476 = vmatprep.subr.bf16.mxu0 0
          %477 = vmatpush1.bf16.xpose.msra.mxu0 0
          %478 = vmatprep.subr.bf16.mxu0 0
          %479 = vmatpush1.bf16.xpose.msra.mxu0 0
          %480 = vmatprep.subr.bf16.mxu0 0
          %481 = vmatpush1.bf16.xpose.msra.mxu0 0
          %482 = vmatprep.subr.bf16.mxu0 0
          %483 = vmatpush1.bf16.xpose.msra.mxu0 0
          %484 = vmatprep.subr.bf16.mxu0 0
          %485 = vmatpush1.bf16.xpose.msra.mxu0 0
          %486 = vmatprep.subr.bf16.mxu0 0
          %487 = vmatpush1.bf16.xpose.msra.mxu0 0
          %488 = vmatprep.subr.bf16.mxu0 0
          %489 = vmatpush1.bf16.xpose.msra.mxu0 0
          %490 = vmatprep.subr.bf16.mxu0 0
          %491 = vmatpush1.bf16.xpose.msra.mxu0 0
          %492 = vmatprep.subr.bf16.mxu0 0
          %493 = vmatpush1.bf16.xpose.msra.mxu0 0
          %494 = vmatprep.subr.bf16.mxu0 0
          %495 = vmatpush1.bf16.xpose.msra.mxu0 0
          %496 = vmatprep.subr.bf16.mxu0 0
          %497 = vmatpush1.bf16.xpose.msra.mxu0 0
          %498 = vmatprep.subr.bf16.mxu0 0
          %499 = vmatpush1.bf16.xpose.msra.mxu0 0
          %500 = vmatprep.mubr.bf16.mxu0 0
          %501 = vmatmul.mubr.bf16.gmra.mrb[0].mxu0 %v463
          %v502 = vpop.f32.mrb[0].mxu0
          %v503 = vadd.f32 0.0, %v502
          %v504 = vpop.f32.mrb[0].mxu0
          %v505 = vpop.f32.mrb[0].mxu0
          %v506 = vpop.f32.mrb[0].mxu0
          %507 = vdwg.mxu0
          %v508 = vmul.f32 %v503, 0.17677669
          %v509 = vxor.u32 %v508, 2147483648
          %v510 = vmul.f32 %v509, 1.442695
          %v511 = vpow.pop %v510
          %v512 = vadd.f32 %v511, 1.0
          %v513 = vrcp.pop %v512
          %v514 = vmul.f32 1.0, %v513
          %v515 = vmul.f32 %v508, %v514
          %v516 = vsel %vm343, %v515, 0.0
          %v517 = vpack.c.bf16 %v516, %v516
          %v519 = vunpack.c.l.b16 %v346
          %v520 = vpack.c.b16 %v519, %v519
          %521 = vrot.lane.b32.xlu0 %v520, 96
          %v522 = vpop.permute.xlu0 %521
          %v524 = vsel %vm404, %v517, 0
          %v527 = vsel %vm408, %v522, 0
          %529 = vmatprep.subr.bf16.mxu0 0
          %530 = vmatpush1.bf16.msra.mxu0 %v527
          %531 = vmatprep.subr.bf16.mxu0 0
          %532 = vmatpush1.bf16.msra.mxu0 0
          %533 = vmatprep.subr.bf16.mxu0 0
          %534 = vmatpush1.bf16.msra.mxu0 0
          %535 = vmatprep.subr.bf16.mxu0 0
          %536 = vmatpush1.bf16.msra.mxu0 0
          %537 = vmatprep.subr.bf16.mxu0 0
          %538 = vmatpush1.bf16.msra.mxu0 0
          %539 = vmatprep.subr.bf16.mxu0 0
          %540 = vmatpush1.bf16.msra.mxu0 0
          %541 = vmatprep.subr.bf16.mxu0 0
          %542 = vmatpush1.bf16.msra.mxu0 0
          %543 = vmatprep.subr.bf16.mxu0 0
          %544 = vmatpush1.bf16.msra.mxu0 0
          %545 = vmatprep.subr.bf16.mxu0 0
          %546 = vmatpush1.bf16.msra.mxu0 0
          %547 = vmatprep.subr.bf16.mxu0 0
          %548 = vmatpush1.bf16.msra.mxu0 0
          %549 = vmatprep.subr.bf16.mxu0 0
          %550 = vmatpush1.bf16.msra.mxu0 0
          %551 = vmatprep.subr.bf16.mxu0 0
          %552 = vmatpush1.bf16.msra.mxu0 0
          %553 = vmatprep.subr.bf16.mxu0 0
          %554 = vmatpush1.bf16.msra.mxu0 0
          %555 = vmatprep.subr.bf16.mxu0 0
          %556 = vmatpush1.bf16.msra.mxu0 0
          %557 = vmatprep.subr.bf16.mxu0 0
          %558 = vmatpush1.bf16.msra.mxu0 0
          %559 = vmatprep.subr.bf16.mxu0 0
          %560 = vmatpush1.bf16.msra.mxu0 0
          %561 = vmatprep.mubr.bf16.mxu0 0
          %562 = vmatmul.mubr.bf16.gmra.mrb[0].mxu0 %v524
          %v563 = vpop.f32.mrb[0].mxu0
          %v564 = vadd.f32 0.0, %v563
          %v565 = vpop.f32.mrb[0].mxu0
          %v566 = vpop.f32.mrb[0].mxu0
          %v567 = vpop.f32.mrb[0].mxu0
          %568 = vdwg.mxu0
          %570 = vrot.lane.b32.xlu0 %v564, 32
          %v571 = vpop.permute.xlu0 %570
          %v573 = vsel %vm347, %v447, %v571
          %v574 = vld [vmem:[#allocation2] sm:$0xff]
          %v575 = vadd.f32 %v574, %v573
          %vm576 = vcmask 523264
          %577 = vst.msk [vmem:[#allocation2] sm:$0xff] %vm576, %v575
        $region44: #{tpu_custom_call.1} parent=31 // pred_fallthru
          _
        // Predicated region
        $region45: #{tpu_custom_call.1} parent=31 // pred_check
          %p578 = pneg %p287
        $region46: #{tpu_custom_call.1} parent=31 // pred_check_branch
          %580 = sbr.rel (%p578) target = $region48
        $region47: #{tpu_custom_call.1} parent=31 // pred_region
          %v581 = vld [vmem:[#allocation2] sm:$0xff]
          %v582 = vmul.f32 %v581, 0.125
          %vm583 = vcmask 523264
          %584 = vst.msk [vmem:[%s266] sm:$0xff] %vm583, %v582
        $region48: #{tpu_custom_call.1} parent=31 // pred_fallthru
          _
        %s585 = sand.u32 %s148, 1
        %s586 = scalar_lea.sflag [#allocation9], %s585
        %s587 = sand.u32 %s148, 1
        %s588 = smul.addr %s587, 8
        %s589 = scalar_lea.vmem [#allocation10], %s588
        // Predicated region
        $region49: #{tpu_custom_call.1} parent=31 // pred_check
          %p590 = pneg %p158
        $region50: #{tpu_custom_call.1} parent=31 // pred_check_branch
          %592 = sbr.rel (%p590) target = $region52
        $region51: #{tpu_custom_call.1} parent=31 // pred_region
          %s594 = ssub.s32 128, 128
          %595 = vsyncadd %s586, %s594
          %s596 = sadd.s32 %s41, %s40
          %s597 = smul.addr %s596, 128
          %s598 = scalar_lea.hbm %s6, %s597
          %s600 = sshll.u32 %s589, 4
          %s601 = int_to_ptr.vmem [resolvable:$true] %s600
          %603 = dma.vmem_to_hbm [thread:$0]  %s601, 128, %s598, %s586
        $region52: #{tpu_custom_call.1} parent=31 // pred_fallthru
          _
      $region32: #{tpu_custom_call.1} parent=5 // pred_fallthru
        _
      %p604 = scmp.le.s32.totalorder 2, %s30
      // Predicated region
      $region53: #{tpu_custom_call.1} parent=5 // pred_check
        %p605 = pneg %p604
      $region54: #{tpu_custom_call.1} parent=5 // pred_check_branch
        %607 = sbr.rel (%p605) target = $region56
      $region55: #{tpu_custom_call.1} parent=5 // pred_region
        %s608 = ssub.s32 %s30, 2
        // Predicated region
        $region57: #{tpu_custom_call.1} parent=55 // pred_check
          %p609 = pneg %p164
        $region58: #{tpu_custom_call.1} parent=55 // pred_check_branch
          %611 = sbr.rel (%p609) target = $region60
        $region59: #{tpu_custom_call.1} parent=55 // pred_region
          %s612 = sand.u32 %s149, 1
          %s613 = scalar_lea.sflag [#allocation9], %s612
          %s614 = sand.u32 %s149, 1
          %s615 = smul.addr %s614, 8
          %s616 = scalar_lea.vmem [#allocation10], %s615
          %617 = dma.done %s613, 128
        $region60: #{tpu_custom_call.1} parent=55 // pred_fallthru
          _
      $region56: #{tpu_custom_call.1} parent=5 // pred_fallthru
        _
    $region6: #{tpu_custom_call.1} parent=1 // loop_footer
      %s34 = sadd.s32 1, %s30
    $region7: #{tpu_custom_call.1} parent=1 // loop_footer_branch
      %29 = sbr.rel target = $region3
    $region8: #{tpu_custom_call.1} parent=1 // loop_exit
      _
    %618 = vsyncpa [#allocation8], 1
    %s619 = scalar_lea.sflag [#allocation8], 1
    %620 = vsyncpa %s619, 1
    %621 = vsyncpa [#allocation9], 1
    %s622 = scalar_lea.sflag [#allocation9], 1
    %623 = vsyncpa %s622, 1

</llo_original>
